<compile_context>
chip_gen: v6e
topology: v6e:2x2x1
jax: 0.10.0
libtpu: 0.0.40
codegen_flags: <defaults>
</compile_context>

<pallas_src>
import functools

import jax
import jax.numpy as jnp
from jax import lax
from jax.experimental import pallas as pl
from jax.experimental.pallas import tpu as pltpu

IN_DIM = 256
HID1, HID2, HID3, OUT_DIM = 128, 64, 32, 1

# 8192-row f32 x tiles: 2 x 8 MiB stream buffers + ~15 MiB of f32/bf16
# intermediates stays well inside v7x's 64 MiB/TC VMEM while amortizing the
# ~0.35 us per-grid-step overhead to <5% on all generations.
MAX_TILE_B = 8192

# lhs contracts its dim 1, rhs contracts its dim 1 ("NT" matmul, the same
# dimension-number pattern the official Pallas flash-attention kernel uses):
# (1, 32) . (tile_b, 32)^T -> (1, tile_b).
_NT_DIMS = (((1,), (1,)), ((), ()))


def _round_up(n, m):
    return ((n + m - 1) // m) * m


def _leaky_relu(v, slope=0.02):
    return jnp.where(v >= 0, v, slope * v)


def discriminator2_kernel(x_ref,
                          w1_ref, b1_ref,
                          w2_ref, b2_ref,
                          w3_ref, b3_ref,
                          w4_ref, b4_ref,
                          out_ref):
    """Fused 4-layer MLP + sigmoid on one (tile_b, 256) batch tile."""
    cd = w1_ref.dtype  # bf16 MXU input dtype; accumulation stays f32.

    # In-kernel f32 -> bf16 cast (VPU); x streamed from HBM in original dtype.
    x = x_ref[...].astype(cd)

    h = jnp.dot(x, w1_ref[...], preferred_element_type=jnp.float32) + b1_ref[...]
    h = _leaky_relu(h)

    h = jnp.dot(h.astype(cd), w2_ref[...],
                preferred_element_type=jnp.float32) + b2_ref[...]
    h = _leaky_relu(h)

    h = jnp.dot(h.astype(cd), w3_ref[...],
                preferred_element_type=jnp.float32) + b3_ref[...]
    h = _leaky_relu(h)

    # Final 32 -> 1 layer done transposed so the logits land lane-dense:
    # (1, 32) . (tile_b, 32)^T -> (1, tile_b).  Kept in f32 (negligible MXU
    # cost) for accuracy and a safe transpose path.
    logits = lax.dot_general(w4_ref[...], h, _NT_DIMS,
                             preferred_element_type=jnp.float32) + b4_ref[...]

    # Exact sigmoid: exp on the EUP, result guaranteed inside [0, 1].
    sig = 1.0 / (1.0 + jnp.exp(-logits))
    out_ref[...] = sig.reshape(out_ref.shape)


def _resident_spec(shape):
    # Full-shape block + constant index_map -> parameter stays VMEM-resident
    # across all grid steps (no re-DMA per batch tile).
    return pl.BlockSpec(shape, lambda i: (0, 0))


def _select_tile_b(B):
    if B <= MAX_TILE_B:
        # Prefer two unpadded tiles so both v7x TensorCores get work; otherwise
        # one full-array tile (block == full dim is always layout-legal, no pad).
        if B >= 256 and B % 16 == 0:
            return B // 2
        return B
    grid_b = pl.cdiv(B, MAX_TILE_B)
    return _round_up(pl.cdiv(B, grid_b), 8)


@functools.partial(jax.jit, static_argnames=("tile_b",))
def discriminator2_forward(x, params, *, tile_b=None):
    """x: (B, 256) float array. Returns (B, 1) float32 validity scores."""
    (w1, b1), (w2, b2), (w3, b3), (w4, b4) = params
    B = x.shape[0]

    if tile_b is None:
        tile_b = _select_tile_b(B)
    grid_b = pl.cdiv(B, tile_b)
    Bp = grid_b * tile_b

    x_in = x
    if Bp != B:
        # Only large batches whose size is not a multiple of 8 hit this copy.
        x_in = jnp.pad(x, ((0, Bp - B), (0, 0)))

    cd = jnp.bfloat16
    w1c, w2c, w3c = (w.astype(cd) for w in (w1, w2, w3))
    b1f, b2f, b3f = (b.astype(jnp.float32) for b in (b1, b2, b3))
    w4r = w4.reshape(1, HID3).astype(jnp.float32)   # (1, 32) row, f32 (tiny)
    b4f = b4.reshape(1, 1).astype(jnp.float32)

    flops_per_row = 2 * (IN_DIM * HID1 + HID1 * HID2 + HID2 * HID3 + HID3 * OUT_DIM)
    weight_bytes = sum(int(a.size) * a.dtype.itemsize
                       for a in (w1c, b1f, w2c, b2f, w3c, b3f, w4r, b4f))
    cost = pl.CostEstimate(
        flops=int(Bp) * flops_per_row,
        transcendentals=int(Bp),
        bytes_accessed=int(Bp) * IN_DIM * x_in.dtype.itemsize
        + int(Bp) * 4 + weight_bytes,
    )

    out = pl.pallas_call(
        discriminator2_kernel,
        out_shape=jax.ShapeDtypeStruct((grid_b, 1, tile_b), jnp.float32),
        grid=(grid_b,),
        in_specs=[
            pl.BlockSpec((tile_b, IN_DIM), lambda i: (i, 0)),   # streamed x tile
            _resident_spec(w1c.shape), _resident_spec(b1f.shape),
            _resident_spec(w2c.shape), _resident_spec(b2f.shape),
            _resident_spec(w3c.shape), _resident_spec(b3f.shape),
            _resident_spec(w4r.shape), _resident_spec(b4f.shape),
        ],
        out_specs=pl.BlockSpec((1, 1, tile_b), lambda i: (i, 0, 0)),
        compiler_params=pltpu.CompilerParams(
            dimension_semantics=("parallel",),      # megacore shard on v7x
            vmem_limit_bytes=64 * 1024 * 1024,
        ),
        cost_estimate=cost,
    )(x_in, w1c, b1f, w2c, b2f, w3c, b3f, w4r, b4f)

    return out.reshape(Bp)[:B].reshape(B, OUT_DIM)


def init_params(key):
    """Deterministic init mimicking nn.Linear default (uniform +/- 1/sqrt(fan_in)).

    Weights are stored as (in, out) [= PyTorch W.T], biases as (1, out).
    """
    dims = [(IN_DIM, HID1), (HID1, HID2), (HID2, HID3), (HID3, OUT_DIM)]
    params = []
    for fan_in, fan_out in dims:
        key, kw, kb = jax.random.split(key, 3)
        bound = 1.0 / jnp.sqrt(fan_in)
        w = jax.random.uniform(kw, (fan_in, fan_out), jnp.float32, -bound, bound)
        b = jax.random.uniform(kb, (1, fan_out), jnp.float32, -bound, bound)
        params.append((w, b))
    return params


def reference_forward(x, params):
    h = x.astype(jnp.float32)
    for i, (w, b) in enumerate(params):
        h = h @ w + b
        if i < 3:
            h = jnp.where(h >= 0, h, 0.02 * h)
    return jax.nn.sigmoid(h)


if __name__ == "__main__":
    key = jax.random.PRNGKey(0)
    key, kx1, kx2 = jax.random.split(key, 3)
    params = init_params(key)

    # Small single-tile batch.
    batch = 8
    x = jax.random.normal(kx1, (batch, IN_DIM), jnp.float32)
    out = jax.block_until_ready(discriminator2_forward(x, params))
    ref = reference_forward(x, params)
    assert out.shape == (batch, OUT_DIM), out.shape
    assert bool(jnp.all(out >= 0.0)) and bool(jnp.all(out <= 1.0))
    # bf16 matmul inputs -> loosened tolerance vs the f32 reference.
    assert jnp.allclose(out, ref, atol=2e-2, rtol=2e-2), jnp.max(jnp.abs(out - ref))

    # Mid-size batch exercising the grid_b=2 (megacore) path, no padding.
    batch2 = 272
    x2 = jax.random.normal(kx2, (batch2, IN_DIM), jnp.float32)
    out2 = jax.block_until_ready(discriminator2_forward(x2, params))
    ref2 = reference_forward(x2, params)
    assert out2.shape == (batch2, OUT_DIM), out2.shape
    assert jnp.allclose(out2, ref2, atol=2e-2, rtol=2e-2), jnp.max(jnp.abs(out2 - ref2))

    print("KERNEL_OK")
</pallas_src>

<mosaic_0001>
module attributes {stable_mosaic.version = 11 : i64} {
  func.func @discriminator2_kernel(%arg0: i32, %arg1: memref<8x256xf32, #tpu.memory_space<vmem>>, %arg2: memref<256x128xbf16, #tpu.memory_space<vmem>>, %arg3: memref<1x128xf32, #tpu.memory_space<vmem>>, %arg4: memref<128x64xbf16, #tpu.memory_space<vmem>>, %arg5: memref<1x64xf32, #tpu.memory_space<vmem>>, %arg6: memref<64x32xbf16, #tpu.memory_space<vmem>>, %arg7: memref<1x32xf32, #tpu.memory_space<vmem>>, %arg8: memref<1x32xf32, #tpu.memory_space<vmem>>, %arg9: memref<1x1xf32, #tpu.memory_space<vmem>>, %arg10: memref<1x1x8xf32, #tpu.memory_space<vmem>>) attributes {dimension_semantics = [#tpu.dimension_semantics<parallel>], iteration_bounds = array<i64: 1>, scalar_prefetch = 0 : i64, scratch_operands = 0 : i64, tpu.core_type = #tpu.core_type<tc>, window_params = [{transform_indices = @transform_0, window_bounds = array<i64: 8, 256>}, {pipeline_mode = #tpu.pipeline_mode<synchronous>, transform_indices = @transform_1, window_bounds = array<i64: 256, 128>}, {pipeline_mode = #tpu.pipeline_mode<synchronous>, transform_indices = @transform_2, window_bounds = array<i64: 1, 128>}, {pipeline_mode = #tpu.pipeline_mode<synchronous>, transform_indices = @transform_3, window_bounds = array<i64: 128, 64>}, {pipeline_mode = #tpu.pipeline_mode<synchronous>, transform_indices = @transform_4, window_bounds = array<i64: 1, 64>}, {pipeline_mode = #tpu.pipeline_mode<synchronous>, transform_indices = @transform_5, window_bounds = array<i64: 64, 32>}, {pipeline_mode = #tpu.pipeline_mode<synchronous>, transform_indices = @transform_6, window_bounds = array<i64: 1, 32>}, {pipeline_mode = #tpu.pipeline_mode<synchronous>, transform_indices = @transform_7, window_bounds = array<i64: 1, 32>}, {pipeline_mode = #tpu.pipeline_mode<synchronous>, transform_indices = @transform_8, window_bounds = array<i64: 1, 1>}, {transform_indices = @transform_9, window_bounds = array<i64: 1, 1, 8>}]} {
    %c0 = arith.constant 0 : index
    %c0_0 = arith.constant 0 : index
    %0 = vector.load %arg1[%c0, %c0_0] : memref<8x256xf32, #tpu.memory_space<vmem>>, vector<8x256xf32>
    %1 = arith.truncf %0 : vector<8x256xf32> to vector<8x256xbf16>
    %c0_1 = arith.constant 0 : index
    %c0_2 = arith.constant 0 : index
    %2 = vector.load %arg2[%c0_1, %c0_2] : memref<256x128xbf16, #tpu.memory_space<vmem>>, vector<256x128xbf16>
    %cst = arith.constant dense<0.000000e+00> : vector<8x128xf32>
    %3 = tpu.matmul %1, %2, %cst {dimension_numbers = #tpu.dot_dimension_numbers<[1], [0], [0], [1], [0, 0, 1, 1], [], []>} : vector<8x256xbf16>, vector<256x128xbf16>, vector<8x128xf32> -> vector<8x128xf32>
    %c0_3 = arith.constant 0 : index
    %c0_4 = arith.constant 0 : index
    %4 = vector.load %arg3[%c0_3, %c0_4] : memref<1x128xf32, #tpu.memory_space<vmem>>, vector<1x128xf32>
    %5 = vector.broadcast %4 : vector<1x128xf32> to vector<8x128xf32>
    %6 = arith.addf %3, %5 : vector<8x128xf32>
    %cst_5 = arith.constant 0.000000e+00 : f32
    %7 = vector.broadcast %cst_5 : f32 to vector<8x128xf32>
    %8 = arith.cmpf oge, %6, %7 : vector<8x128xf32>
    %cst_6 = arith.constant 2.000000e-02 : f32
    %9 = vector.broadcast %cst_6 : f32 to vector<8x128xf32>
    %10 = arith.mulf %9, %6 : vector<8x128xf32>
    %11 = arith.select %8, %6, %10 : vector<8x128xi1>, vector<8x128xf32>
    %12 = arith.truncf %11 : vector<8x128xf32> to vector<8x128xbf16>
    %c0_7 = arith.constant 0 : index
    %c0_8 = arith.constant 0 : index
    %13 = vector.load %arg4[%c0_7, %c0_8] : memref<128x64xbf16, #tpu.memory_space<vmem>>, vector<128x64xbf16>
    %cst_9 = arith.constant dense<0.000000e+00> : vector<8x64xf32>
    %14 = tpu.matmul %12, %13, %cst_9 {dimension_numbers = #tpu.dot_dimension_numbers<[1], [0], [0], [1], [0, 0, 1, 1], [], []>} : vector<8x128xbf16>, vector<128x64xbf16>, vector<8x64xf32> -> vector<8x64xf32>
    %c0_10 = arith.constant 0 : index
    %c0_11 = arith.constant 0 : index
    %15 = vector.load %arg5[%c0_10, %c0_11] : memref<1x64xf32, #tpu.memory_space<vmem>>, vector<1x64xf32>
    %16 = vector.broadcast %15 : vector<1x64xf32> to vector<8x64xf32>
    %17 = arith.addf %14, %16 : vector<8x64xf32>
    %cst_12 = arith.constant 0.000000e+00 : f32
    %18 = vector.broadcast %cst_12 : f32 to vector<8x64xf32>
    %19 = arith.cmpf oge, %17, %18 : vector<8x64xf32>
    %cst_13 = arith.constant 2.000000e-02 : f32
    %20 = vector.broadcast %cst_13 : f32 to vector<8x64xf32>
    %21 = arith.mulf %20, %17 : vector<8x64xf32>
    %22 = arith.select %19, %17, %21 : vector<8x64xi1>, vector<8x64xf32>
    %23 = arith.truncf %22 : vector<8x64xf32> to vector<8x64xbf16>
    %c0_14 = arith.constant 0 : index
    %c0_15 = arith.constant 0 : index
    %24 = vector.load %arg6[%c0_14, %c0_15] : memref<64x32xbf16, #tpu.memory_space<vmem>>, vector<64x32xbf16>
    %cst_16 = arith.constant dense<0.000000e+00> : vector<8x32xf32>
    %25 = tpu.matmul %23, %24, %cst_16 {dimension_numbers = #tpu.dot_dimension_numbers<[1], [0], [0], [1], [0, 0, 1, 1], [], []>} : vector<8x64xbf16>, vector<64x32xbf16>, vector<8x32xf32> -> vector<8x32xf32>
    %c0_17 = arith.constant 0 : index
    %c0_18 = arith.constant 0 : index
    %26 = vector.load %arg7[%c0_17, %c0_18] : memref<1x32xf32, #tpu.memory_space<vmem>>, vector<1x32xf32>
    %27 = vector.broadcast %26 : vector<1x32xf32> to vector<8x32xf32>
    %28 = arith.addf %25, %27 : vector<8x32xf32>
    %cst_19 = arith.constant 0.000000e+00 : f32
    %29 = vector.broadcast %cst_19 : f32 to vector<8x32xf32>
    %30 = arith.cmpf oge, %28, %29 : vector<8x32xf32>
    %cst_20 = arith.constant 2.000000e-02 : f32
    %31 = vector.broadcast %cst_20 : f32 to vector<8x32xf32>
    %32 = arith.mulf %31, %28 : vector<8x32xf32>
    %33 = arith.select %30, %28, %32 : vector<8x32xi1>, vector<8x32xf32>
    %c0_21 = arith.constant 0 : index
    %c0_22 = arith.constant 0 : index
    %34 = vector.load %arg8[%c0_21, %c0_22] : memref<1x32xf32, #tpu.memory_space<vmem>>, vector<1x32xf32>
    %cst_23 = arith.constant dense<0.000000e+00> : vector<1x8xf32>
    %35 = tpu.matmul %34, %33, %cst_23 {dimension_numbers = #tpu.dot_dimension_numbers<[1], [1], [0], [0], [0, 0, 1, 0], [], []>} : vector<1x32xf32>, vector<8x32xf32>, vector<1x8xf32> -> vector<1x8xf32>
    %c0_24 = arith.constant 0 : index
    %c0_25 = arith.constant 0 : index
    %36 = vector.load %arg9[%c0_24, %c0_25] : memref<1x1xf32, #tpu.memory_space<vmem>>, vector<1x1xf32>
    %37 = vector.broadcast %36 : vector<1x1xf32> to vector<1x8xf32>
    %38 = arith.addf %35, %37 : vector<1x8xf32>
    %cst_26 = arith.constant 0.000000e+00 : f32
    %39 = vector.broadcast %cst_26 : f32 to vector<1x8xf32>
    %40 = arith.subf %39, %38 : vector<1x8xf32>
    %41 = math.exp %40 : vector<1x8xf32>
    %cst_27 = arith.constant 1.000000e+00 : f32
    %42 = vector.broadcast %cst_27 : f32 to vector<1x8xf32>
    %43 = arith.addf %42, %41 : vector<1x8xf32>
    %cst_28 = arith.constant 1.000000e+00 : f32
    %44 = vector.broadcast %cst_28 : f32 to vector<1x8xf32>
    %45 = arith.divf %44, %43 : vector<1x8xf32>
    %46 = vector.shape_cast %45 : vector<1x8xf32> to vector<1x1x8xf32>
    %c0_29 = arith.constant 0 : index
    %c0_30 = arith.constant 0 : index
    %c0_31 = arith.constant 0 : index
    %47 = vector.load %arg10[%c0_29, %c0_30, %c0_31] : memref<1x1x8xf32, #tpu.memory_space<vmem>>, vector<1x1x8xf32>
    tpu.vector_store %arg10[%c0_29, %c0_30, %c0_31], %46 {strides = array<i32>} : memref<1x1x8xf32, #tpu.memory_space<vmem>>, vector<1x1x8xf32>,
    return
  }
  func.func @transform_0(%arg0: i32) -> (i32, i32) {
    %c0_i32 = arith.constant 0 : i32
    %c0_i32_0 = arith.constant 0 : i32
    return %arg0, %c0_i32 : i32, i32
  }
  func.func @transform_1(%arg0: i32) -> (i32, i32) {
    %c0_i32 = arith.constant 0 : i32
    %c0_i32_0 = arith.constant 0 : i32
    %c0_i32_1 = arith.constant 0 : i32
    return %c0_i32, %c0_i32_0 : i32, i32
  }
  func.func @transform_2(%arg0: i32) -> (i32, i32) {
    %c0_i32 = arith.constant 0 : i32
    %c0_i32_0 = arith.constant 0 : i32
    %c0_i32_1 = arith.constant 0 : i32
    return %c0_i32, %c0_i32_0 : i32, i32
  }
  func.func @transform_3(%arg0: i32) -> (i32, i32) {
    %c0_i32 = arith.constant 0 : i32
    %c0_i32_0 = arith.constant 0 : i32
    %c0_i32_1 = arith.constant 0 : i32
    return %c0_i32, %c0_i32_0 : i32, i32
  }
  func.func @transform_4(%arg0: i32) -> (i32, i32) {
    %c0_i32 = arith.constant 0 : i32
    %c0_i32_0 = arith.constant 0 : i32
    %c0_i32_1 = arith.constant 0 : i32
    return %c0_i32, %c0_i32_0 : i32, i32
  }
  func.func @transform_5(%arg0: i32) -> (i32, i32) {
    %c0_i32 = arith.constant 0 : i32
    %c0_i32_0 = arith.constant 0 : i32
    %c0_i32_1 = arith.constant 0 : i32
    return %c0_i32, %c0_i32_0 : i32, i32
  }
  func.func @transform_6(%arg0: i32) -> (i32, i32) {
    %c0_i32 = arith.constant 0 : i32
    %c0_i32_0 = arith.constant 0 : i32
    %c0_i32_1 = arith.constant 0 : i32
    return %c0_i32, %c0_i32_0 : i32, i32
  }
  func.func @transform_7(%arg0: i32) -> (i32, i32) {
    %c0_i32 = arith.constant 0 : i32
    %c0_i32_0 = arith.constant 0 : i32
    %c0_i32_1 = arith.constant 0 : i32
    return %c0_i32, %c0_i32_0 : i32, i32
  }
  func.func @transform_8(%arg0: i32) -> (i32, i32) {
    %c0_i32 = arith.constant 0 : i32
    %c0_i32_0 = arith.constant 0 : i32
    %c0_i32_1 = arith.constant 0 : i32
    return %c0_i32, %c0_i32_0 : i32, i32
  }
  func.func @transform_9(%arg0: i32) -> (i32, i32, i32) {
    %c0_i32 = arith.constant 0 : i32
    %c0_i32_0 = arith.constant 0 : i32
    %c0_i32_1 = arith.constant 0 : i32
    return %arg0, %c0_i32, %c0_i32_0 : i32, i32, i32
  }
}

</mosaic_0001>

<llo_original>
// kernel: discriminator2_forward.1
$region0: #{discriminator2_forward.1}
  #allocation0 [shape = 'u32[]', space=smem, size = 0x4, offset = 0x4, fixed_abs, tag = 'smem constant byte address 0x4 - core index']
  #allocation1 [shape = 'u32[144,128]{1,0:T(1,128)}', space=vmem, size = 0x12000, scoped, tag = 'internal scratch']
  #allocation2 [shape = 'f32[1,1]{1,0:T(1,128)S(1)}', space=vmem, size = 0x200, scoped, tag = 'scoped memory for discriminator2_forward.1']
  %s0 = inlined_call_operand.vmem [shape: f32[8,256], index: 0, kind: input, shape index: {}]
  %s1 = inlined_call_operand.vmem [shape: bf16[256,128], index: 1, kind: input, shape index: {}]
  %s2 = inlined_call_operand.vmem [shape: f32[1,128], index: 2, kind: input, shape index: {}]
  %s3 = inlined_call_operand.vmem [shape: bf16[128,64], index: 3, kind: input, shape index: {}]
  %s4 = inlined_call_operand.vmem [shape: f32[1,64], index: 4, kind: input, shape index: {}]
  %s5 = inlined_call_operand.vmem [shape: bf16[64,32], index: 5, kind: input, shape index: {}]
  %s6 = inlined_call_operand.vmem [shape: f32[1,32], index: 6, kind: input, shape index: {}]
  %s7 = inlined_call_operand.vmem [shape: f32[1,32], index: 7, kind: input, shape index: {}]
  %s8 = inlined_call_operand.<no memory space> [shape: f32[1,1], index: 8, kind: input, shape index: {}]
  %s9 = inlined_call_operand.hbm [shape: f32[1,1,8], index: 9, kind: output, shape index: {}]
  %s10 = sld [smem:[#allocation0]]
  $region46: #{discriminator2_forward.1} parent=0
    _
  %s12 = ssub.s32 1, %s10
  %s13 = scalar_select 0, %s12, %s10
  %v14 = vstv %s8
  %15 = vst [vmem:[#allocation2] sm:$0x1] %v14
  $region1: #{discriminator2_forward.1} parent=0
    #allocation3 [shape = 'u8[512]{0}', space=vmem, size = 0x400, scoped, tag = 'output window, operand 0, single buffered']
    #allocation4 [shape = 's32[1]{0}', space=sflag, size = 0x4, scoped, tag = 'scoped memory for discriminator2_forward.1']
    %16 = vsyncpa [#allocation4], 0
    // Predicated region
    $region2: #{discriminator2_forward.1} parent=1 // pred_check
      _
    $region3: #{discriminator2_forward.1} parent=1 // pred_check_branch
      %18 = sbr.rel (0) target = $region5
    $region4: #{discriminator2_forward.1} parent=1 // pred_region
      _
    $region5: #{discriminator2_forward.1} parent=1 // pred_fallthru
      _
    // Predicated region
    $region6: #{discriminator2_forward.1} parent=1 // pred_check
      _
    $region7: #{discriminator2_forward.1} parent=1 // pred_check_branch
      %20 = sbr.rel (0) target = $region9
    $region8: #{discriminator2_forward.1} parent=1 // pred_region
      _
    $region9: #{discriminator2_forward.1} parent=1 // pred_fallthru
      _
    // Predicated region
    $region10: #{discriminator2_forward.1} parent=1 // pred_check
      _
    $region11: #{discriminator2_forward.1} parent=1 // pred_check_branch
      %22 = sbr.rel (0) target = $region13
    $region12: #{discriminator2_forward.1} parent=1 // pred_region
      _
    $region13: #{discriminator2_forward.1} parent=1 // pred_fallthru
      _
    // Predicated region
    $region14: #{discriminator2_forward.1} parent=1 // pred_check
      _
    $region15: #{discriminator2_forward.1} parent=1 // pred_check_branch
      %24 = sbr.rel (0) target = $region17
    $region16: #{discriminator2_forward.1} parent=1 // pred_region
      _
    $region17: #{discriminator2_forward.1} parent=1 // pred_fallthru
      _
    // Predicated region
    $region18: #{discriminator2_forward.1} parent=1 // pred_check
      _
    $region19: #{discriminator2_forward.1} parent=1 // pred_check_branch
      %26 = sbr.rel (0) target = $region21
    $region20: #{discriminator2_forward.1} parent=1 // pred_region
      _
    $region21: #{discriminator2_forward.1} parent=1 // pred_fallthru
      _
    // Predicated region
    $region22: #{discriminator2_forward.1} parent=1 // pred_check
      _
    $region23: #{discriminator2_forward.1} parent=1 // pred_check_branch
      %28 = sbr.rel (0) target = $region25
    $region24: #{discriminator2_forward.1} parent=1 // pred_region
      _
    $region25: #{discriminator2_forward.1} parent=1 // pred_fallthru
      _
    // Predicated region
    $region26: #{discriminator2_forward.1} parent=1 // pred_check
      _
    $region27: #{discriminator2_forward.1} parent=1 // pred_check_branch
      %30 = sbr.rel (0) target = $region29
    $region28: #{discriminator2_forward.1} parent=1 // pred_region
      _
    $region29: #{discriminator2_forward.1} parent=1 // pred_fallthru
      _
    // Predicated region
    $region30: #{discriminator2_forward.1} parent=1 // pred_check
      _
    $region31: #{discriminator2_forward.1} parent=1 // pred_check_branch
      %32 = sbr.rel (0) target = $region33
    $region32: #{discriminator2_forward.1} parent=1 // pred_region
      _
    $region33: #{discriminator2_forward.1} parent=1 // pred_fallthru
      _
    // Predicated region
    $region34: #{discriminator2_forward.1} parent=1 // pred_check
      _
    $region35: #{discriminator2_forward.1} parent=1 // pred_check_branch
      %34 = sbr.rel (0) target = $region37
    $region36: #{discriminator2_forward.1} parent=1 // pred_region
      _
    $region37: #{discriminator2_forward.1} parent=1 // pred_fallthru
      _
    %v36 = vld [vmem:[%s0] sm:$0xff]
    %v37 = vld [vmem:[%s0 + $0x8] sm:$0xff]
    %v38 = vpack.c.bf16 %v36, %v36
    %v39 = vpack.c.bf16 %v37, %v37
    %v40 = vld [vmem:[%s1] sm:$0xf]
    %v41 = vld [vmem:[%s1 + $0x4] sm:$0xf]
    %v42 = vld [vmem:[%s1 + $0x8] sm:$0xf]
    %v43 = vld [vmem:[%s1 + $0xc] sm:$0xf]
    %v44 = vld [vmem:[%s1 + $0x10] sm:$0xf]
    %v45 = vld [vmem:[%s1 + $0x14] sm:$0xf]
    %v46 = vld [vmem:[%s1 + $0x18] sm:$0xf]
    %v47 = vld [vmem:[%s1 + $0x1c] sm:$0xf]
    %v48 = vld [vmem:[%s1 + $0x20] sm:$0xf]
    %v49 = vld [vmem:[%s1 + $0x24] sm:$0xf]
    %v50 = vld [vmem:[%s1 + $0x28] sm:$0xf]
    %v51 = vld [vmem:[%s1 + $0x2c] sm:$0xf]
    %v52 = vld [vmem:[%s1 + $0x30] sm:$0xf]
    %v53 = vld [vmem:[%s1 + $0x34] sm:$0xf]
    %v54 = vld [vmem:[%s1 + $0x38] sm:$0xf]
    %v55 = vld [vmem:[%s1 + $0x3c] sm:$0xf]
    %v56 = vld [vmem:[%s1 + $0x40] sm:$0xf]
    %v57 = vld [vmem:[%s1 + $0x44] sm:$0xf]
    %v58 = vld [vmem:[%s1 + $0x48] sm:$0xf]
    %v59 = vld [vmem:[%s1 + $0x4c] sm:$0xf]
    %v60 = vld [vmem:[%s1 + $0x50] sm:$0xf]
    %v61 = vld [vmem:[%s1 + $0x54] sm:$0xf]
    %v62 = vld [vmem:[%s1 + $0x58] sm:$0xf]
    %v63 = vld [vmem:[%s1 + $0x5c] sm:$0xf]
    %v64 = vld [vmem:[%s1 + $0x60] sm:$0xf]
    %v65 = vld [vmem:[%s1 + $0x64] sm:$0xf]
    %v66 = vld [vmem:[%s1 + $0x68] sm:$0xf]
    %v67 = vld [vmem:[%s1 + $0x6c] sm:$0xf]
    %v68 = vld [vmem:[%s1 + $0x70] sm:$0xf]
    %v69 = vld [vmem:[%s1 + $0x74] sm:$0xf]
    %v70 = vld [vmem:[%s1 + $0x78] sm:$0xf]
    %v71 = vld [vmem:[%s1 + $0x7c] sm:$0xf]
    %v72 = vld [vmem:[%s2] sm:$0x1]
    %v74 = vlaneseq
    %v75 = vshrl.u32 %v74, 7
    %v76 = vsub.s32 0, %v75
    %v77 = vrot.slane %v72, %v76
    %v111 = vunpack.c.l.b16 %v40
    %v112 = vunpack.c.l.b16 %v41
    %v113 = vunpack.c.l.b16 %v42
    %v114 = vunpack.c.l.b16 %v43
    %v115 = vunpack.c.l.b16 %v44
    %v116 = vunpack.c.l.b16 %v45
    %v117 = vunpack.c.l.b16 %v46
    %v118 = vunpack.c.l.b16 %v47
    %v119 = vunpack.c.l.b16 %v48
    %v120 = vunpack.c.l.b16 %v49
    %v121 = vunpack.c.l.b16 %v50
    %v122 = vunpack.c.l.b16 %v51
    %v123 = vunpack.c.l.b16 %v52
    %v124 = vunpack.c.l.b16 %v53
    %v125 = vunpack.c.l.b16 %v54
    %v126 = vunpack.c.l.b16 %v55
    %v127 = vunpack.c.l.b16 %v56
    %v128 = vunpack.c.l.b16 %v57
    %v129 = vunpack.c.l.b16 %v58
    %v130 = vunpack.c.l.b16 %v59
    %v131 = vunpack.c.l.b16 %v60
    %v132 = vunpack.c.l.b16 %v61
    %v133 = vunpack.c.l.b16 %v62
    %v134 = vunpack.c.l.b16 %v63
    %v135 = vunpack.c.l.b16 %v64
    %v136 = vunpack.c.l.b16 %v65
    %v137 = vunpack.c.l.b16 %v66
    %v138 = vunpack.c.l.b16 %v67
    %v139 = vunpack.c.l.b16 %v68
    %v140 = vunpack.c.l.b16 %v69
    %v141 = vunpack.c.l.b16 %v70
    %v142 = vunpack.c.l.b16 %v71
    %v143 = vpack.c.b16 %v112, %v111
    %v144 = vpack.c.b16 %v114, %v113
    %v145 = vpack.c.b16 %v116, %v115
    %v146 = vpack.c.b16 %v118, %v117
    %v147 = vpack.c.b16 %v120, %v119
    %v148 = vpack.c.b16 %v122, %v121
    %v149 = vpack.c.b16 %v124, %v123
    %v150 = vpack.c.b16 %v126, %v125
    %v151 = vpack.c.b16 %v128, %v127
    %v152 = vpack.c.b16 %v130, %v129
    %v153 = vpack.c.b16 %v132, %v131
    %v154 = vpack.c.b16 %v134, %v133
    %v155 = vpack.c.b16 %v136, %v135
    %v156 = vpack.c.b16 %v138, %v137
    %v157 = vpack.c.b16 %v140, %v139
    %v158 = vpack.c.b16 %v142, %v141
    %175 = vmatprep.subr.bf16.mxu0 0
    %176 = vmatpush1.bf16.msra.mxu0 %v150
    %177 = vmatprep.subr.bf16.mxu0 0
    %178 = vmatpush1.bf16.msra.mxu0 %v149
    %179 = vmatprep.subr.bf16.mxu0 0
    %180 = vmatpush1.bf16.msra.mxu0 %v148
    %181 = vmatprep.subr.bf16.mxu0 0
    %182 = vmatpush1.bf16.msra.mxu0 %v147
    %183 = vmatprep.subr.bf16.mxu0 0
    %184 = vmatpush1.bf16.msra.mxu0 %v146
    %185 = vmatprep.subr.bf16.mxu0 0
    %186 = vmatpush1.bf16.msra.mxu0 %v145
    %187 = vmatprep.subr.bf16.mxu0 0
    %188 = vmatpush1.bf16.msra.mxu0 %v144
    %189 = vmatprep.subr.bf16.mxu0 0
    %190 = vmatpush1.bf16.msra.mxu0 %v143
    %191 = vmatprep.subr.bf16.mxu0 0
    %192 = vmatpush2.bf16.msra.mxu0 %v158
    %193 = vmatprep.subr.bf16.mxu0 0
    %194 = vmatpush2.bf16.msra.mxu0 %v157
    %195 = vmatprep.subr.bf16.mxu0 0
    %196 = vmatpush2.bf16.msra.mxu0 %v156
    %197 = vmatprep.subr.bf16.mxu0 0
    %198 = vmatpush2.bf16.msra.mxu0 %v155
    %199 = vmatprep.subr.bf16.mxu0 0
    %200 = vmatpush2.bf16.msra.mxu0 %v154
    %201 = vmatprep.subr.bf16.mxu0 0
    %202 = vmatpush2.bf16.msra.mxu0 %v153
    %203 = vmatprep.subr.bf16.mxu0 0
    %204 = vmatpush2.bf16.msra.mxu0 %v152
    %205 = vmatprep.subr.bf16.mxu0 0
    %206 = vmatpush2.bf16.msra.mxu0 %v151
    %207 = vmatprep.mubr.bf16.mxu0 %v39
    %208 = vmatmul.mubr.bf16.gmra.mxu0 %v38
    %v209 = vpop.f32.mrf.mxu0
    %v210 = vadd.f32 %v77, %v209
    %v211 = vpop.f32.mrf.mxu0
    %v212 = vpop.f32.mrf.mxu0
    %v213 = vpop.f32.mrf.mxu0
    %214 = vdwg.mxu0
    %vm215 = vcmp.ge.f32.partialorder %v210, 0.0
    %v216 = vmul.f32 %v210, 0.02
    %v217 = vsel %vm215, %v210, %v216
    %v218 = vpack.c.bf16 %v217, %v217
    %v219 = vld [vmem:[%s3] sm:$0xf]
    %v220 = vld [vmem:[%s3 + $0x4] sm:$0xf]
    %v221 = vld [vmem:[%s3 + $0x8] sm:$0xf]
    %v222 = vld [vmem:[%s3 + $0xc] sm:$0xf]
    %v223 = vld [vmem:[%s3 + $0x10] sm:$0xf]
    %v224 = vld [vmem:[%s3 + $0x14] sm:$0xf]
    %v225 = vld [vmem:[%s3 + $0x18] sm:$0xf]
    %v226 = vld [vmem:[%s3 + $0x1c] sm:$0xf]
    %v227 = vld [vmem:[%s3 + $0x20] sm:$0xf]
    %v228 = vld [vmem:[%s3 + $0x24] sm:$0xf]
    %v229 = vld [vmem:[%s3 + $0x28] sm:$0xf]
    %v230 = vld [vmem:[%s3 + $0x2c] sm:$0xf]
    %v231 = vld [vmem:[%s3 + $0x30] sm:$0xf]
    %v232 = vld [vmem:[%s3 + $0x34] sm:$0xf]
    %v233 = vld [vmem:[%s3 + $0x38] sm:$0xf]
    %v234 = vld [vmem:[%s3 + $0x3c] sm:$0xf]
    %v235 = vld [vmem:[%s4] sm:$0x1]
    %v237 = vlaneseq
    %v238 = vshrl.u32 %v237, 7
    %v239 = vsub.s32 0, %v238
    %v240 = vrot.slane %v235, %v239
    %v258 = vunpack.c.l.b16 %v219
    %v259 = vunpack.c.l.b16 %v220
    %v260 = vunpack.c.l.b16 %v221
    %v261 = vunpack.c.l.b16 %v222
    %v262 = vunpack.c.l.b16 %v223
    %v263 = vunpack.c.l.b16 %v224
    %v264 = vunpack.c.l.b16 %v225
    %v265 = vunpack.c.l.b16 %v226
    %v266 = vunpack.c.l.b16 %v227
    %v267 = vunpack.c.l.b16 %v228
    %v268 = vunpack.c.l.b16 %v229
    %v269 = vunpack.c.l.b16 %v230
    %v270 = vunpack.c.l.b16 %v231
    %v271 = vunpack.c.l.b16 %v232
    %v272 = vunpack.c.l.b16 %v233
    %v273 = vunpack.c.l.b16 %v234
    %v274 = vpack.c.b16 %v259, %v258
    %v275 = vpack.c.b16 %v261, %v260
    %v276 = vpack.c.b16 %v263, %v262
    %v277 = vpack.c.b16 %v265, %v264
    %v278 = vpack.c.b16 %v267, %v266
    %v279 = vpack.c.b16 %v269, %v268
    %v280 = vpack.c.b16 %v271, %v270
    %v281 = vpack.c.b16 %v273, %v272
    %290 = vmatprep.subr.bf16.mxu0 0
    %291 = vmatpush1.bf16.msra.mxu0 %v281
    %292 = vmatprep.subr.bf16.mxu0 0
    %293 = vmatpush1.bf16.msra.mxu0 %v280
    %294 = vmatprep.subr.bf16.mxu0 0
    %295 = vmatpush1.bf16.msra.mxu0 %v279
    %296 = vmatprep.subr.bf16.mxu0 0
    %297 = vmatpush1.bf16.msra.mxu0 %v278
    %298 = vmatprep.subr.bf16.mxu0 0
    %299 = vmatpush1.bf16.msra.mxu0 %v277
    %300 = vmatprep.subr.bf16.mxu0 0
    %301 = vmatpush1.bf16.msra.mxu0 %v276
    %302 = vmatprep.subr.bf16.mxu0 0
    %303 = vmatpush1.bf16.msra.mxu0 %v275
    %304 = vmatprep.subr.bf16.mxu0 0
    %305 = vmatpush1.bf16.msra.mxu0 %v274
    %306 = vmatprep.subr.bf16.mxu0 0
    %307 = vmatpush2.bf16.msra.mxu0 0
    %308 = vmatprep.subr.bf16.mxu0 0
    %309 = vmatpush2.bf16.msra.mxu0 0
    %310 = vmatprep.subr.bf16.mxu0 0
    %311 = vmatpush2.bf16.msra.mxu0 0
    %312 = vmatprep.subr.bf16.mxu0 0
    %313 = vmatpush2.bf16.msra.mxu0 0
    %314 = vmatprep.subr.bf16.mxu0 0
    %315 = vmatpush2.bf16.msra.mxu0 0
    %316 = vmatprep.subr.bf16.mxu0 0
    %317 = vmatpush2.bf16.msra.mxu0 0
    %318 = vmatprep.subr.bf16.mxu0 0
    %319 = vmatpush2.bf16.msra.mxu0 0
    %320 = vmatprep.subr.bf16.mxu0 0
    %321 = vmatpush2.bf16.msra.mxu0 0
    %322 = vmatprep.mubr.bf16.mxu0 0
    %323 = vmatmul.mubr.bf16.gmra.mxu0 %v218
    %v324 = vpop.f32.mrf.mxu0
    %v325 = vadd.f32 %v240, %v324
    %v326 = vpop.f32.mrf.mxu0
    %v327 = vpop.f32.mrf.mxu0
    %v328 = vpop.f32.mrf.mxu0
    %329 = vdwg.mxu0
    %vm330 = vcmp.ge.f32.partialorder %v325, 0.0
    %v331 = vmul.f32 %v325, 0.02
    %v332 = vsel %vm330, %v325, %v331
    %v333 = vpack.c.bf16 %v332, %v332
    %v334 = vld [vmem:[%s5] sm:$0xf]
    %v335 = vld [vmem:[%s5 + $0x4] sm:$0xf]
    %v336 = vld [vmem:[%s5 + $0x8] sm:$0xf]
    %v337 = vld [vmem:[%s5 + $0xc] sm:$0xf]
    %v338 = vld [vmem:[%s5 + $0x10] sm:$0xf]
    %v339 = vld [vmem:[%s5 + $0x14] sm:$0xf]
    %v340 = vld [vmem:[%s5 + $0x18] sm:$0xf]
    %v341 = vld [vmem:[%s5 + $0x1c] sm:$0xf]
    %v342 = vld [vmem:[%s6] sm:$0x1]
    %v344 = vlaneseq
    %v345 = vshrl.u32 %v344, 7
    %v346 = vsub.s32 0, %v345
    %v347 = vrot.slane %v342, %v346
    %v357 = vunpack.c.l.b16 %v334
    %v358 = vunpack.c.l.b16 %v335
    %v359 = vunpack.c.l.b16 %v336
    %v360 = vunpack.c.l.b16 %v337
    %v361 = vunpack.c.l.b16 %v338
    %v362 = vunpack.c.l.b16 %v339
    %v363 = vunpack.c.l.b16 %v340
    %v364 = vunpack.c.l.b16 %v341
    %v365 = vpack.c.b16 %v358, %v357
    %v366 = vpack.c.b16 %v360, %v359
    %v367 = vpack.c.b16 %v362, %v361
    %v368 = vpack.c.b16 %v364, %v363
    %vm373 = vcmask 523264
    %v375 = vsel %vm373, %v333, 0
    %377 = vmatprep.subr.bf16.mxu0 0
    %378 = vmatpush1.bf16.msra.mxu0 0
    %379 = vmatprep.subr.bf16.mxu0 0
    %380 = vmatpush1.bf16.msra.mxu0 0
    %381 = vmatprep.subr.bf16.mxu0 0
    %382 = vmatpush1.bf16.msra.mxu0 0
    %383 = vmatprep.subr.bf16.mxu0 0
    %384 = vmatpush1.bf16.msra.mxu0 0
    %385 = vmatprep.subr.bf16.mxu0 0
    %386 = vmatpush1.bf16.msra.mxu0 %v368
    %387 = vmatprep.subr.bf16.mxu0 0
    %388 = vmatpush1.bf16.msra.mxu0 %v367
    %389 = vmatprep.subr.bf16.mxu0 0
    %390 = vmatpush1.bf16.msra.mxu0 %v366
    %391 = vmatprep.subr.bf16.mxu0 0
    %392 = vmatpush1.bf16.msra.mxu0 %v365
    %393 = vmatprep.subr.bf16.mxu0 0
    %394 = vmatpush2.bf16.msra.mxu0 0
    %395 = vmatprep.subr.bf16.mxu0 0
    %396 = vmatpush2.bf16.msra.mxu0 0
    %397 = vmatprep.subr.bf16.mxu0 0
    %398 = vmatpush2.bf16.msra.mxu0 0
    %399 = vmatprep.subr.bf16.mxu0 0
    %400 = vmatpush2.bf16.msra.mxu0 0
    %401 = vmatprep.subr.bf16.mxu0 0
    %402 = vmatpush2.bf16.msra.mxu0 0
    %403 = vmatprep.subr.bf16.mxu0 0
    %404 = vmatpush2.bf16.msra.mxu0 0
    %405 = vmatprep.subr.bf16.mxu0 0
    %406 = vmatpush2.bf16.msra.mxu0 0
    %407 = vmatprep.subr.bf16.mxu0 0
    %408 = vmatpush2.bf16.msra.mxu0 0
    %409 = vmatprep.mubr.bf16.mxu0 0
    %410 = vmatmul.mubr.bf16.gmra.mxu0 %v375
    %v411 = vpop.f32.mrf.mxu0
    %v412 = vadd.f32 %v347, %v411
    %v413 = vpop.f32.mrf.mxu0
    %v414 = vpop.f32.mrf.mxu0
    %v415 = vpop.f32.mrf.mxu0
    %416 = vdwg.mxu0
    %vm417 = vcmp.ge.f32.partialorder %v412, 0.0
    %v418 = vmul.f32 %v412, 0.02
    %v419 = vsel %vm417, %v412, %v418
    %v420 = vld [vmem:[%s7] sm:$0x1]
    %v421 = vld [vmem:[#allocation2] sm:$0x1]
    %423 = vset.pattern.permute.xlu0 0
    %424 = vperm.xlu0 %423, %v421
    %v425 = vpop.permute.xlu0 %424
    %v427 = vlaneseq
    %v428 = vshrl.u32 %v427, 7
    %v429 = vsub.s32 0, %v428
    %v430 = vrot.slane %v425, %v429
    %vm431 = vcmask 261120
    %v433 = vsel %vm431, %v420, 0
    %v436 = vsel %vm431, %v419, 0
    %438 = vmatprep.subr.mxu0 0.0
    %439 = vmatpush1.xpose.msra.mxu0 0.0
    %440 = vmatprep.subr.mxu0 0.0
    %441 = vmatpush1.xpose.msra.mxu0 0.0
    %442 = vmatprep.subr.mxu0 0.0
    %443 = vmatpush1.xpose.msra.mxu0 0.0
    %444 = vmatprep.subr.mxu0 0.0
    %445 = vmatpush1.xpose.msra.mxu0 0.0
    %446 = vmatprep.subr.mxu0 0.0
    %447 = vmatpush1.xpose.msra.mxu0 0.0
    %448 = vmatprep.subr.mxu0 0.0
    %449 = vmatpush1.xpose.msra.mxu0 0.0
    %450 = vmatprep.subr.mxu0 0.0
    %451 = vmatpush1.xpose.msra.mxu0 0.0
    %452 = vmatprep.subr.mxu0 0.0
    %453 = vmatpush1.xpose.msra.mxu0 0.0
    %454 = vmatprep.subr.mxu0 0.0
    %455 = vmatpush1.xpose.msra.mxu0 0.0
    %456 = vmatprep.subr.mxu0 0.0
    %457 = vmatpush1.xpose.msra.mxu0 0.0
    %458 = vmatprep.subr.mxu0 0.0
    %459 = vmatpush1.xpose.msra.mxu0 0.0
    %460 = vmatprep.subr.mxu0 0.0
    %461 = vmatpush1.xpose.msra.mxu0 0.0
    %462 = vmatprep.subr.mxu0 0.0
    %463 = vmatpush1.xpose.msra.mxu0 0.0
    %464 = vmatprep.subr.mxu0 0.0
    %465 = vmatpush1.xpose.msra.mxu0 0.0
    %466 = vmatprep.subr.mxu0 0.0
    %467 = vmatpush1.xpose.msra.mxu0 0.0
    %468 = vmatprep.subr.mxu0 0.0
    %469 = vmatpush1.xpose.msra.mxu0 %v436
    %470 = vmatprep.subr.mxu0 0.0
    %471 = vmatpush2.xpose.msra.mxu0 0.0
    %472 = vmatprep.subr.mxu0 0.0
    %473 = vmatpush2.xpose.msra.mxu0 0.0
    %474 = vmatprep.subr.mxu0 0.0
    %475 = vmatpush2.xpose.msra.mxu0 0.0
    %476 = vmatprep.subr.mxu0 0.0
    %477 = vmatpush2.xpose.msra.mxu0 0.0
    %478 = vmatprep.subr.mxu0 0.0
    %479 = vmatpush2.xpose.msra.mxu0 0.0
    %480 = vmatprep.subr.mxu0 0.0
    %481 = vmatpush2.xpose.msra.mxu0 0.0
    %482 = vmatprep.subr.mxu0 0.0
    %483 = vmatpush2.xpose.msra.mxu0 0.0
    %484 = vmatprep.subr.mxu0 0.0
    %485 = vmatpush2.xpose.msra.mxu0 0.0
    %486 = vmatprep.subr.mxu0 0.0
    %487 = vmatpush2.xpose.msra.mxu0 0.0
    %488 = vmatprep.subr.mxu0 0.0
    %489 = vmatpush2.xpose.msra.mxu0 0.0
    %490 = vmatprep.subr.mxu0 0.0
    %491 = vmatpush2.xpose.msra.mxu0 0.0
    %492 = vmatprep.subr.mxu0 0.0
    %493 = vmatpush2.xpose.msra.mxu0 0.0
    %494 = vmatprep.subr.mxu0 0.0
    %495 = vmatpush2.xpose.msra.mxu0 0.0
    %496 = vmatprep.subr.mxu0 0.0
    %497 = vmatpush2.xpose.msra.mxu0 0.0
    %498 = vmatprep.subr.mxu0 0.0
    %499 = vmatpush2.xpose.msra.mxu0 0.0
    %500 = vmatprep.subr.mxu0 0.0
    %501 = vmatpush2.xpose.msra.mxu0 0.0
    %502 = vmatprep.mubr.f32.mxu0 0.0
    %503 = vmatmul.mubr.f32.gmra.mxu0 %v433
    %v504 = vpop.f32.mrf.mxu0
    %v505 = vadd.f32 %v430, %v504
    %v506 = vpop.f32.mrf.mxu0
    %507 = vdwg.mxu0
    %v508 = vsub.f32 0.0, %v505
    %v509 = vmul.f32 %v508, 1.442695
    %v510 = vpow.pop %v509
    %v511 = vadd.f32 %v510, 1.0
    %v512 = vrcp.pop %v511
    %v513 = vmul.f32 1.0, %v512
    %vm514 = vcmask 57344
    %515 = vst.msk [vmem:[#allocation3] sm:$0x1] %vm514, %v513
    // Predicated region
    $region38: #{discriminator2_forward.1} parent=1 // pred_check
      _
    $region39: #{discriminator2_forward.1} parent=1 // pred_check_branch
      %517 = sbr.rel (0) target = $region41
    $region40: #{discriminator2_forward.1} parent=1 // pred_region
      %s519 = ssub.s32 16, 16
      %520 = vsyncadd [#allocation4], %s519
      %s522 = sshll.u32 [#allocation3], 4
      %s523 = int_to_ptr.vmem [resolvable:$true] %s522
      %525 = dma.vmem_to_hbm [thread:$0]  %s523, 16, %s9, [#allocation4]
    $region41: #{discriminator2_forward.1} parent=1 // pred_fallthru
      _
    // Predicated region
    $region42: #{discriminator2_forward.1} parent=1 // pred_check
      _
    $region43: #{discriminator2_forward.1} parent=1 // pred_check_branch
      %527 = sbr.rel (0) target = $region45
    $region44: #{discriminator2_forward.1} parent=1 // pred_region
      %528 = dma.done [#allocation4], 16
    $region45: #{discriminator2_forward.1} parent=1 // pred_fallthru
      _
    %529 = vsyncpa [#allocation4], 1

</llo_original>
